<compile_context>
chip_gen: v7x
topology: tpu7x:2x2x1
jax: 0.10.0
libtpu: 0.0.40
codegen_flags: <defaults>
</compile_context>

<pallas_src>
import math

import jax
import jax.numpy as jnp
from jax import lax
from jax.experimental import pallas as pl
from jax.experimental.pallas import tpu as pltpu


# ---------------------------------------------------------------------------
# In-kernel positional-encoding tile (single sin pass; constants come from VMEM)
# ---------------------------------------------------------------------------
def _pe_tile(consts_ref, s_base, blk, H):
    """consts_ref: [2, H] f32 (row 0 = inv_freq, row 1 = phase). Returns [blk, H] f32."""
    inv_freq = consts_ref[0:1, :]                                        # [1, H]
    phase = consts_ref[1:2, :]                                           # [1, H]
    pos = (s_base + lax.broadcasted_iota(jnp.int32, (blk, 1), 0)).astype(jnp.float32)
    # even lanes: sin(pos * inv_freq); odd lanes: sin(pos * inv_freq + pi/2) == cos(...)
    return jnp.sin(pos * inv_freq + phase)                               # [blk, H]


# ---------------------------------------------------------------------------
# Kernel A: embedding table resident in HBM; scalar-prefetch-driven row DMAs
# ---------------------------------------------------------------------------
def _embed_gather_hbm_kernel(ids_ref, consts_ref, emb_hbm, out_ref, rows, sem):
    """One (batch b, seq-block j) output tile.

    ids_ref : [B * S_pad] int32 (SMEM, scalar-prefetched) flattened token ids
    consts  : [2, H]      f32   (VMEM)                    inv_freq / phase rows
    emb_hbm : [V, H]            (HBM / ANY)               embedding table
    out_ref : [blk, H]          (VMEM)                    output tile (batch squeezed)
    rows    : [blk, H]          (VMEM scratch)            gathered rows
    sem     : single shared DMA semaphore
    """
    blk, H = out_ref.shape
    b = pl.program_id(0)
    j = pl.program_id(1)
    s_pad = pl.num_programs(1) * blk
    s_base = j * blk
    flat_base = b * s_pad + s_base

    # 1) One row DMA per token (HBM table -> VMEM rows), all on one shared
    #    semaphore.  Keep the descriptors so the waits match the starts exactly.
    copies = []
    for t in range(blk):
        tok = ids_ref[flat_base + t]
        cp = pltpu.make_async_copy(
            emb_hbm.at[pl.ds(tok, 1)], rows.at[pl.ds(t, 1)], sem)
        cp.start()
        copies.append(cp)

    # 2) Positional encoding on the otherwise-idle VPU/EUP while the DMAs fly.
    pe = _pe_tile(consts_ref, s_base, blk, H)

    # 3) Wait for the gathered rows, add PE, lane-dense store of the whole tile.
    for cp in copies:
        cp.wait()
    out_ref[...] = (rows[...] + pe).astype(out_ref.dtype)


# ---------------------------------------------------------------------------
# Kernel B: small table fast path; table pipelined into VMEM, dynamic indexing
# ---------------------------------------------------------------------------
def _embed_gather_vmem_kernel(ids_ref, consts_ref, emb_ref, out_ref, rows):
    blk, H = out_ref.shape
    b = pl.program_id(0)
    j = pl.program_id(1)
    s_pad = pl.num_programs(1) * blk
    s_base = j * blk
    flat_base = b * s_pad + s_base

    def gather_row(t, carry):
        tok = ids_ref[flat_base + t]
        rows[pl.ds(t, 1), :] = emb_ref[pl.ds(tok, 1), :]
        return carry

    lax.fori_loop(0, blk, gather_row, 0)

    pe = _pe_tile(consts_ref, s_base, blk, H)
    out_ref[...] = (rows[...] + pe).astype(out_ref.dtype)


# ---------------------------------------------------------------------------
# Host-side helpers
# ---------------------------------------------------------------------------
def _round_up(x, m):
    return ((x + m - 1) // m) * m


def _pe_constants(hidden_size):
    """[2, H] f32: row 0 = 1 / 10000**(2i/H) (2i = 2*(h//2)), row 1 = pi/2 on odd cols."""
    h = jnp.arange(hidden_size)
    two_i = (h - (h % 2)).astype(jnp.float32)                 # 2 * (h // 2)
    inv_freq = 1.0 / (10000.0 ** (two_i / hidden_size))
    phase = (h % 2).astype(jnp.float32) * (math.pi / 2.0)
    return jnp.stack([inv_freq, phase], axis=0)               # [2, H]


def transformer_embedding(ids, emb_table, *, seq_block=256, out_dtype=None,
                          vmem_table_bytes=4 * 1024 * 1024,
                          vmem_tile_budget=8 * 1024 * 1024,
                          force_hbm_gather=False):
    """ids: [B, S] int32, emb_table: [V, H]  ->  [B, S, H] out_dtype.

    Equivalent to TransformerEmbedding.forward in eval mode:
        drop(tok_emb(ids) + pos_emb(ids))   with dropout == identity.
    """
    B, S = ids.shape
    V, H = emb_table.shape
    if out_dtype is None:
        out_dtype = emb_table.dtype                           # model dtype by default
    out_bytes = jnp.dtype(out_dtype).itemsize
    tbl_bytes = jnp.dtype(emb_table.dtype).itemsize

    # Block size: multiple of 8 (sublane), as large as the VMEM tile budget allows
    # (rows scratch + 2 double-buffered output tiles), H kept as the full lane dim.
    seq_block = max(8, (seq_block // 8) * 8)
    blk = min(seq_block, _round_up(S, 8))
    per_token = H * (2 * out_bytes + tbl_bytes)
    max_blk = max(8, ((vmem_tile_budget // per_token) // 8) * 8)
    blk = min(blk, max_blk)

    n_blocks = pl.cdiv(S, blk)
    S_pad = n_blocks * blk

    ids = jnp.clip(ids.astype(jnp.int32), 0, V - 1)           # never drive an OOB DMA
    if S_pad != S:
        ids = jnp.pad(ids, ((0, 0), (0, S_pad - S)))          # pad with id 0 (valid row)
    # NOTE: the whole [B * S_pad] id vector is scalar-prefetched into SMEM; 1-D SMEM
    # pads to next_pow2(4N) bytes, fine up to a few hundred K tokens.
    ids_flat = ids.reshape(B * S_pad)

    consts = _pe_constants(H)                                 # [2, H] f32

    out_spec = pl.BlockSpec((None, blk, H), lambda b, j, ids: (b, j, 0))
    consts_spec = pl.BlockSpec((2, H), lambda b, j, ids: (0, 0))

    use_vmem_table = (not force_hbm_gather) and (V * H * tbl_bytes <= vmem_table_bytes)
    if use_vmem_table:
        kernel = _embed_gather_vmem_kernel
        table_spec = pl.BlockSpec((V, H), lambda b, j, ids: (0, 0))   # full table in VMEM
        scratch = [pltpu.VMEM((blk, H), emb_table.dtype)]
    else:
        kernel = _embed_gather_hbm_kernel
        table_spec = pl.BlockSpec(memory_space=pl.ANY)                # table stays in HBM
        scratch = [pltpu.VMEM((blk, H), emb_table.dtype),
                   pltpu.SemaphoreType.DMA]                           # one shared DMA sem

    grid_spec = pltpu.PrefetchScalarGridSpec(
        num_scalar_prefetch=1,                     # ids -> SMEM, drive the gather
        grid=(B, n_blocks),                        # both axes parallel (megacore / 2 TCs)
        in_specs=[consts_spec, table_spec],
        out_specs=out_spec,
        scratch_shapes=scratch,
    )

    out = pl.pallas_call(
        kernel,
        out_shape=jax.ShapeDtypeStruct((B, S_pad, H), out_dtype),
        grid_spec=grid_spec,
        compiler_params=pltpu.CompilerParams(
            dimension_semantics=("parallel", "parallel")),
    )(ids_flat, consts, emb_table)

    return out[:, :S, :]


# ---------------------------------------------------------------------------
# Pure-JAX references (match the PyTorch module exactly)
# ---------------------------------------------------------------------------
def make_positional_encoding(hidden_size, max_len):
    """Matches PositionalEncoding.__init__."""
    pos = jnp.arange(0, max_len, dtype=jnp.float32)[:, None]          # [L, 1]
    _2i = jnp.arange(0, hidden_size, 2, dtype=jnp.float32)            # [H/2]
    div = 10000.0 ** (_2i / hidden_size)
    enc = jnp.zeros((max_len, hidden_size), dtype=jnp.float32)
    enc = enc.at[:, 0::2].set(jnp.sin(pos / div))
    enc = enc.at[:, 1::2].set(jnp.cos(pos / div))
    return enc                                                         # [L, H]


def make_embedding_table(key, vocab_size, hidden_size, pad_idx):
    """nn.Embedding default init: N(0, 1); padding_idx row zeroed."""
    w = jax.random.normal(key, (vocab_size, hidden_size), dtype=jnp.float32)
    w = w.at[pad_idx, :].set(0.0)
    return w


if __name__ == "__main__":
    # Module hyper-params (small, consistent with the forward pass)
    vocab_size = 32
    hidden_size = 32
    max_len = 16
    pad_idx = 0
    drop_prob = 0.1  # eval mode -> identity

    # Inputs
    B, S = 2, 8
    key = jax.random.PRNGKey(0)
    k_emb, k_ids = jax.random.split(key)

    emb_table = make_embedding_table(k_emb, vocab_size, hidden_size, pad_idx)
    ids = jax.random.randint(k_ids, (B, S), 0, vocab_size, dtype=jnp.int32)

    # Pure-JAX reference: drop(tok_emb(x) + pos_emb(x)) with dropout in eval mode
    pos_enc = make_positional_encoding(hidden_size, max_len)
    ref = emb_table[ids] + pos_enc[None, :S, :]

    # Fast path (small table -> VMEM-resident gather)
    out_vmem = jax.block_until_ready(transformer_embedding(ids, emb_table))
    # HBM-gather path (large-table code path, forced here to exercise it)
    out_hbm = jax.block_until_ready(
        transformer_embedding(ids, emb_table, force_hbm_gather=True))

    assert out_vmem.shape == (B, S, hidden_size)
    assert out_hbm.shape == (B, S, hidden_size)
    err_v = float(jnp.max(jnp.abs(out_vmem - ref)))
    err_h = float(jnp.max(jnp.abs(out_hbm - ref)))
    assert jnp.allclose(out_vmem, ref, atol=1e-4, rtol=1e-4), err_v
    assert jnp.allclose(out_hbm, ref, atol=1e-4, rtol=1e-4), err_h

    print("KERNEL_OK")
</pallas_src>

<mosaic_0001>
module attributes {stable_mosaic.version = 11 : i64} {
  func.func @_embed_gather_vmem_kernel(%arg0: i32, %arg1: i32, %arg2: memref<16xi32, #tpu.memory_space<smem>>, %arg3: memref<2x32xf32, #tpu.memory_space<vmem>>, %arg4: memref<32x32xf32, #tpu.memory_space<vmem>>, %arg5: memref<1x8x32xf32, #tpu.memory_space<vmem>>, %arg6: memref<8x32xf32, #tpu.memory_space<vmem>>) attributes {dimension_semantics = [#tpu.dimension_semantics<parallel>, #tpu.dimension_semantics<parallel>], iteration_bounds = array<i64: 2, 1>, scalar_prefetch = 1 : i64, scratch_operands = 1 : i64, tpu.core_type = #tpu.core_type<tc>, window_params = [{pipeline_mode = #tpu.pipeline_mode<synchronous>, transform_indices = @transform_0, window_bounds = array<i64: 2, 32>}, {pipeline_mode = #tpu.pipeline_mode<synchronous>, transform_indices = @transform_1, window_bounds = array<i64: 32, 32>}, {transform_indices = @transform_2, window_bounds = array<i64: 1, 8, 32>}]} {
    %c8_i32 = arith.constant 8 : i32
    %0 = arith.muli %arg1, %c8_i32 : i32
    %c8_i32_0 = arith.constant 8 : i32
    %1 = arith.muli %arg0, %c8_i32_0 : i32
    %2 = arith.addi %1, %0 : i32
    %c0_i32 = arith.constant 0 : i32
    %c8_i32_1 = arith.constant 8 : i32
    %3 = arith.addi %c0_i32, %c8_i32_1 : i32
    %c1_i32 = arith.constant 1 : i32
    scf.for %arg7 = %c0_i32 to %3 step %c1_i32  : i32 {
      %21 = arith.addi %2, %arg7 : i32
      %22 = arith.index_cast %21 : i32 to index
      %23 = memref.load %arg2[%22] : memref<16xi32, #tpu.memory_space<smem>>
      %24 = arith.index_cast %23 : i32 to index
      %c0_10 = arith.constant 0 : index
      %25 = vector.load %arg4[%24, %c0_10] : memref<32x32xf32, #tpu.memory_space<vmem>>, vector<1x32xf32>
      %26 = arith.index_cast %arg7 : i32 to index
      %c0_11 = arith.constant 0 : index
      %27 = vector.load %arg6[%26, %c0_11] : memref<8x32xf32, #tpu.memory_space<vmem>>, vector<1x32xf32>
      tpu.vector_store %arg6[%26, %c0_11], %25 {strides = array<i32>} : memref<8x32xf32, #tpu.memory_space<vmem>>, vector<1x32xf32>,
    }
    %c8_i32_2 = arith.constant 8 : i32
    %c0 = arith.constant 0 : index
    %c0_3 = arith.constant 0 : index
    %4 = vector.load %arg3[%c0, %c0_3] : memref<2x32xf32, #tpu.memory_space<vmem>>, vector<1x32xf32>
    %c1 = arith.constant 1 : index
    %c0_4 = arith.constant 0 : index
    %5 = vector.load %arg3[%c1, %c0_4] : memref<2x32xf32, #tpu.memory_space<vmem>>, vector<1x32xf32>
    %6 = tpu.iota {dimensions = array<i32: 0>} : vector<8x1xi32>
    %7 = vector.broadcast %0 : i32 to vector<8x1xi32>
    %8 = arith.addi %7, %6 : vector<8x1xi32>
    %9 = arith.sitofp %8 : vector<8x1xi32> to vector<8x1xf32>
    %10 = vector.broadcast %9 : vector<8x1xf32> to vector<8x32xf32>
    %11 = vector.broadcast %4 : vector<1x32xf32> to vector<8x32xf32>
    %12 = arith.mulf %10, %11 : vector<8x32xf32>
    %13 = vector.broadcast %5 : vector<1x32xf32> to vector<8x32xf32>
    %14 = arith.addf %12, %13 : vector<8x32xf32>
    %15 = math.sin %14 : vector<8x32xf32>
    %c0_5 = arith.constant 0 : index
    %c0_6 = arith.constant 0 : index
    %16 = vector.load %arg6[%c0_5, %c0_6] : memref<8x32xf32, #tpu.memory_space<vmem>>, vector<8x32xf32>
    %17 = arith.addf %16, %15 : vector<8x32xf32>
    %c0_7 = arith.constant 0 : index
    %c0_8 = arith.constant 0 : index
    %c0_9 = arith.constant 0 : index
    %18 = vector.load %arg5[%c0_7, %c0_8, %c0_9] : memref<1x8x32xf32, #tpu.memory_space<vmem>>, vector<1x8x32xf32>
    %19 = vector.shape_cast %18 : vector<1x8x32xf32> to vector<8x32xf32>
    %20 = vector.shape_cast %17 : vector<8x32xf32> to vector<1x8x32xf32>
    tpu.vector_store %arg5[%c0_7, %c0_8, %c0_9], %20 {strides = array<i32>} : memref<1x8x32xf32, #tpu.memory_space<vmem>>, vector<1x8x32xf32>,
    return
  }
  func.func @transform_0(%arg0: i32, %arg1: i32, %arg2: memref<16xi32, #tpu.memory_space<smem>>) -> (i32, i32) {
    %c0_i32 = arith.constant 0 : i32
    %c0_i32_0 = arith.constant 0 : i32
    %c0_i32_1 = arith.constant 0 : i32
    return %c0_i32, %c0_i32_0 : i32, i32
  }
  func.func @transform_1(%arg0: i32, %arg1: i32, %arg2: memref<16xi32, #tpu.memory_space<smem>>) -> (i32, i32) {
    %c0_i32 = arith.constant 0 : i32
    %c0_i32_0 = arith.constant 0 : i32
    %c0_i32_1 = arith.constant 0 : i32
    return %c0_i32, %c0_i32_0 : i32, i32
  }
  func.func @transform_2(%arg0: i32, %arg1: i32, %arg2: memref<16xi32, #tpu.memory_space<smem>>) -> (i32, i32, i32) {
    %c0_i32 = arith.constant 0 : i32
    %c0_i32_0 = arith.constant 0 : i32
    return %arg0, %arg1, %c0_i32 : i32, i32, i32
  }
}

</mosaic_0001>

<llo_original>
// kernel: tpu_custom_call.1
$region0: #{tpu_custom_call.1}
  #allocation0 [shape = 'u32[]', space=smem, size = 0x4, offset = 0x4, fixed_abs, tag = 'smem constant byte address 0x4 - core index']
  #allocation1 [shape = 'u32[144,128]{1,0:T(1,128)}', space=vmem, size = 0x12000, scoped, tag = 'internal scratch']
  #allocation2 [shape = 'f32[8,32]{1,0:T(8,128)}', space=vmem, size = 0x1000, scoped, tag = 'scratch operand']
  #allocation3 [shape = 's32[1]{0}', space=sflag, size = 0x4, scoped, tag = 'scoped memory for tpu_custom_call.1']
  #allocation4 [shape = 'u8[512]{0}', space=smem, size = 0x200, scoped, tag = 'prefetched SMEM operand 0']
  %s0 = inlined_call_operand.hbm [shape: s32[16], index: 0, kind: input, shape index: {}]
  %s1 = inlined_call_operand.vmem [shape: f32[2,32], index: 1, kind: input, shape index: {}]
  %s2 = inlined_call_operand.hbm [shape: f32[32,32], index: 2, kind: input, shape index: {}]
  %s3 = inlined_call_operand.hbm [shape: f32[2,8,32], index: 3, kind: output, shape index: {}]
  %s4 = sld [smem:[#allocation0]]
  $region52: #{tpu_custom_call.1} parent=0
    _
  %s6 = ssub.s32 1, %s4
  %s7 = scalar_select 0, %s6, %s4
  %9 = dma.hbm_to_smem %s0, 16, [#allocation4], [#allocation3]
  %10 = dma.done [#allocation3], 16
  %11 = sfence
  $region1: #{tpu_custom_call.1} parent=0
    #allocation5 [shape = 'u8[16384]{0}', space=vmem, size = 0x4000, scoped, tag = 'input window, operand 2, single buffered']
    #allocation6 [shape = 's32[2]{0}', space=sflag, size = 0x8, scoped, tag = 'scoped memory for tpu_custom_call.1']
    #allocation7 [shape = 's32[2]{0}', space=sflag, size = 0x8, scoped, tag = 'scoped memory for tpu_custom_call.1']
    #allocation8 [shape = 'u8[8192]{0}', space=vmem, size = 0x2000, scoped, tag = 'output window, operand 0']
    %12 = vsyncpa [#allocation6], 0
    %13 = vsyncpa [#allocation7], 0
    %s14 = scalar_lea.sflag [#allocation7], 1
    %15 = vsyncpa %s14, 0
    loop: start=0, step=1, limit=4
    $region2: #{tpu_custom_call.1} parent=1 // loop_pre_header
      _
    $region3: #{tpu_custom_call.1} parent=1 // loop_header
      %s17 = sphi 0, %s21
      %p18 = scmp.ge.s32.totalorder %s17, 4
      %s24 = sphi 0, %s36
      %s25 = sphi 0, %s32
      %s26 = sphi 0, %s24
      %s27 = sphi 0, %s25
      %s28 = sphi 0, %s26
      %s29 = sphi 0, %s27
      %s37 = sphi 0, %s37
      %s39 = sphi 0, %s37
      %s40 = sphi 0, %s39
      %s54 = sphi 0, %s40
      %s58 = sphi 0, %s58
      %s60 = sphi 0, %s58
      %s61 = sphi 0, %s60
      %s75 = sphi 0, %s61
      %s83 = sphi 0, %s85
      %s86 = sphi 0, %s83
      %s87 = sphi 0, %s86
      %s103 = sphi 0, %s87
    $region4: #{tpu_custom_call.1} parent=1 // loop_header_branch
      %20 = sbr.rel (%p18) target = $region8
    $region5: #{tpu_custom_call.1} parent=1 // loop_body
      %s22 = ssub.s32 %s17, 1
      %s23 = ssub.s32 %s17, 2
      %s30 = sadd.s32 1, %s25
      %p31 = scmp.ge.s32.totalorder %s30, 1
      %s32 = scalar_select %p31, 0, %s30
      %s33 = sadd.s32 1, %s24
      %s34 = scalar_select %p31, %s33, %s24
      %p35 = scmp.ge.s32.totalorder %s34, 2
      %s36 = scalar_select %p35, 0, %s34
      %s38 = sadd.s32 %s37, 1
      %p41 = scmp.eq.s32.totalorder %s17, 1
      %p42 = scmp.ne.s32.totalorder %s37, %s39
      %p43 = scmp.eq.s32.totalorder %s17, 0
      %p44 = por %p42, %p43
      %p45 = scmp.ne.s32.totalorder %s37, %s39
      %p46 = scmp.eq.s32.totalorder %s22, 1
      %p47 = por %p45, %p46
      %p48 = scmp.ne.s32.totalorder %s39, %s40
      %p49 = scmp.eq.s32.totalorder %s22, 0
      %p50 = por %p48, %p49
      %p51 = scmp.ne.s32.totalorder %s39, %s40
      %p52 = scmp.eq.s32.totalorder %s23, 1
      %p53 = por %p51, %p52
      %p55 = scmp.ne.s32.totalorder %s40, %s54
      %p56 = scmp.eq.s32.totalorder %s23, 0
      %p57 = por %p55, %p56
      %s59 = sadd.s32 %s58, 1
      %p62 = scmp.eq.s32.totalorder %s17, 1
      %p63 = scmp.ne.s32.totalorder %s58, %s60
      %p64 = scmp.eq.s32.totalorder %s17, 0
      %p65 = por %p63, %p64
      %p66 = scmp.ne.s32.totalorder %s58, %s60
      %p67 = scmp.eq.s32.totalorder %s22, 1
      %p68 = por %p66, %p67
      %p69 = scmp.ne.s32.totalorder %s60, %s61
      %p70 = scmp.eq.s32.totalorder %s22, 0
      %p71 = por %p69, %p70
      %p72 = scmp.ne.s32.totalorder %s60, %s61
      %p73 = scmp.eq.s32.totalorder %s23, 1
      %p74 = por %p72, %p73
      %p76 = scmp.ne.s32.totalorder %s61, %s75
      %p77 = scmp.eq.s32.totalorder %s23, 0
      %p78 = por %p76, %p77
      %s79 = ssub.s32 %s24, %s36
      %s80 = ssub.s32 %s25, %s32
      %s81 = sor.u32 %s79, %s80
      %p82 = scmp.eq.s32.totalorder %s81, 0
      %s84 = sadd.s32 %s83, 1
      %s85 = scalar_select %p82, %s83, %s84
      %p88 = pneg %p82
      %p89 = scmp.eq.s32.totalorder %s17, 1
      %p90 = por %p88, %p89
      %p91 = scmp.ne.s32.totalorder %s83, %s86
      %p92 = scmp.eq.s32.totalorder %s17, 0
      %p93 = por %p91, %p92
      %p94 = scmp.ne.s32.totalorder %s83, %s86
      %p95 = scmp.eq.s32.totalorder %s22, 1
      %p96 = por %p94, %p95
      %p97 = scmp.ne.s32.totalorder %s86, %s87
      %p98 = scmp.eq.s32.totalorder %s22, 0
      %p99 = por %p97, %p98
      %p100 = scmp.ne.s32.totalorder %s86, %s87
      %p101 = scmp.eq.s32.totalorder %s23, 1
      %p102 = por %p100, %p101
      %p104 = scmp.ne.s32.totalorder %s87, %s103
      %p105 = scmp.eq.s32.totalorder %s23, 0
      %p106 = por %p104, %p105
      %p107 = scmp.le.s32.totalorder 1, %s17
      %p108 = scmp.lt.s32.totalorder %s17, 3
      %p109 = pnand %p107, %p108
      %p110 = pneg %p109
      // Predicated region
      $region9: #{tpu_custom_call.1} parent=5 // pred_check
        _
      $region10: #{tpu_custom_call.1} parent=5 // pred_check_branch
        %112 = sbr.rel (%p109) target = $region12
      $region11: #{tpu_custom_call.1} parent=5 // pred_region
        %s113 = ssub.s32 %s17, 1
        // Predicated region
        $region13: #{tpu_custom_call.1} parent=11 // pred_check
          %p114 = pneg %p50
        $region14: #{tpu_custom_call.1} parent=11 // pred_check_branch
          %116 = sbr.rel (%p114) target = $region16
        $region15: #{tpu_custom_call.1} parent=11 // pred_region
          _
        $region16: #{tpu_custom_call.1} parent=11 // pred_fallthru
          _
        // Predicated region
        $region17: #{tpu_custom_call.1} parent=11 // pred_check
          %p117 = pneg %p71
        $region18: #{tpu_custom_call.1} parent=11 // pred_check_branch
          %119 = sbr.rel (%p117) target = $region20
        $region19: #{tpu_custom_call.1} parent=11 // pred_region
          %s121 = ssub.s32 512, 512
          %122 = vsyncadd [#allocation6], %s121
          %s123 = sshll.u32 [#allocation5], 4
          %s124 = int_to_ptr.vmem [resolvable:$true] %s123
          %129 = dma.hbm_to_vmem [thread:$0]  %s2, 512, %s124, [#allocation6], 128, 128, 8
        $region20: #{tpu_custom_call.1} parent=11 // pred_fallthru
          _
      $region12: #{tpu_custom_call.1} parent=5 // pred_fallthru
        _
      %p130 = scmp.lt.s32.totalorder %s17, 2
      // Predicated region
      $region21: #{tpu_custom_call.1} parent=5 // pred_check
        %p131 = pneg %p130
      $region22: #{tpu_custom_call.1} parent=5 // pred_check_branch
        %133 = sbr.rel (%p131) target = $region24
      $region23: #{tpu_custom_call.1} parent=5 // pred_region
        _
      $region24: #{tpu_custom_call.1} parent=5 // pred_fallthru
        _
      %p134 = scmp.le.s32.totalorder 1, %s17
      %p135 = scmp.lt.s32.totalorder %s17, 3
      %p136 = pnand %p134, %p135
      %p137 = pneg %p136
      // Predicated region
      $region25: #{tpu_custom_call.1} parent=5 // pred_check
        _
      $region26: #{tpu_custom_call.1} parent=5 // pred_check_branch
        %139 = sbr.rel (%p136) target = $region28
      $region27: #{tpu_custom_call.1} parent=5 // pred_region
        %s140 = ssub.s32 %s17, 1
        // Predicated region
        $region29: #{tpu_custom_call.1} parent=27 // pred_check
          %p141 = pneg %p71
        $region30: #{tpu_custom_call.1} parent=27 // pred_check_branch
          %143 = sbr.rel (%p141) target = $region32
        $region31: #{tpu_custom_call.1} parent=27 // pred_region
          %144 = dma.done [#allocation6], 512
        $region32: #{tpu_custom_call.1} parent=27 // pred_fallthru
          _
        %p145 = pneg %p50
        %p146 = pneg %p47
        %p147 = pneg %p71
        %p148 = pneg %p68
        %p149 = pneg %p99
        %p150 = pneg %p96
        %s151 = sand.u32 %s86, 1
        %s152 = scalar_lea.sflag [#allocation7], %s151
        %s153 = sand.u32 %s86, 1
        %s154 = smul.addr %s153, 8
        %s155 = scalar_lea.vmem [#allocation8], %s154
        %s156 = smul.u32 %s27, 8
        %s157 = smul.u32 %s26, 8
        %s158 = sadd.s32 %s157, %s156
        loop: start=0, step=1, limit=8
        $region33: #{tpu_custom_call.1} parent=27 // loop_pre_header
          _
        $region34: #{tpu_custom_call.1} parent=27 // loop_header
          %s160 = sphi 0, %s164
          %p161 = scmp.ge.s32.totalorder %s160, 8
        $region35: #{tpu_custom_call.1} parent=27 // loop_header_branch
          %163 = sbr.rel (%p161) target = $region39
        $region36: #{tpu_custom_call.1} parent=27 // loop_body
          %s165 = sadd.s32 %s158, %s160
          %s166 = sld [smem:[#allocation4 + %s165]]
          %s167 = scalar_lea.vmem [#allocation5], %s166
          %v168 = vld [vmem:[%s167] sm:$0x1]
          %s169 = scalar_lea.vmem [#allocation2], %s160
          %vm170 = vcmask 253952
          %171 = vst.msk [vmem:[%s169] sm:$0x1] %vm170, %v168
        $region37: #{tpu_custom_call.1} parent=27 // loop_footer
          %s164 = sadd.s32 1, %s160
        $region38: #{tpu_custom_call.1} parent=27 // loop_footer_branch
          %159 = sbr.rel target = $region34
        $region39: #{tpu_custom_call.1} parent=27 // loop_exit
          _
        %v172 = vld [vmem:[%s1] sm:$0x1]
        %v173 = vld [vmem:[%s1 + $0x1] sm:$0x1]
        %v174 = vlaneseq
        %v175 = vshrl.u32 %v174, 7
        %v176 = vstv %s156
        %v177 = vadd.s32 %v176, %v175
        %v178 = vcvt.s32.f32 %v177
        %v179 = vlaneseq
        %v180 = vshrl.u32 %v179, 7
        %v181 = vsub.s32 0, %v180
        %v182 = vrot.slane %v172, %v181
        %v183 = vmul.f32 %v178, %v182
        %v184 = vlaneseq
        %v185 = vshrl.u32 %v184, 7
        %v186 = vsub.s32 0, %v185
        %v187 = vrot.slane %v173, %v186
        %v188 = vadd.f32 %v183, %v187
        %v189 = vand.u32 2147483647, %v188
        %vm190 = vcmp.le.f32.partialorder %v189, 0.7853982
        %vm191 = vcmp.lt.s32.totalorder %v188, 0
        %v192 = vand.u32 %v188, 2139095040
        %v193 = vshrl.u32 %v192, 23
        %v194 = vsub.s32 %v193, 127
        %v195 = vand.u32 2147483647, %v188
        %v196 = vand.u32 %v195, 8388607
        %v197 = vor.u32 %v196, 8388608
        %v198 = vsub.s32 0, %v197
        %v199 = vadd.s32 %v194, 1
        %vm200 = vcmp.gt.s32.totalorder %v199, 0
        %v201 = vsel %vm200, %v199, 0
        %v202 = vshrl.u32 %v201, 5
        %v203 = vand.u32 %v201, 31
        %v204 = vsub.s32 32, %v203
        %v205 = vshrl.u32 683565275, %v204
        %v206 = vshll.u32 683565275, %v203
        %v207 = vshrl.u32 2475754826, %v204
        %v208 = vor.u32 %v206, %v207
        %v209 = vshll.u32 2475754826, %v203
        %v210 = vshrl.u32 2131351028, %v204
        %v211 = vor.u32 %v209, %v210
        %v212 = vshll.u32 2131351028, %v203
        %v213 = vshrl.u32 2102212464, %v204
        %v214 = vor.u32 %v212, %v213
        %v215 = vshll.u32 2102212464, %v203
        %v216 = vshrl.u32 920167782, %v204
        %v217 = vor.u32 %v215, %v216
        %v218 = vshll.u32 920167782, %v203
        %v219 = vshrl.u32 1326507024, %v204
        %v220 = vor.u32 %v218, %v219
        %vm221 = vcmp.lt.s32.totalorder %v202, 1
        %vm222 = vcmp.lt.s32.totalorder %v202, 2
        %vm223 = vcmp.lt.s32.totalorder %v202, 3
        %vm224 = vcmp.lt.s32.totalorder %v202, 4
        %v225 = vsel %vm221, %v205, %v208
        %v226 = vsel %vm224, %v214, 2102212464
        %v227 = vsel %vm223, %v211, %v226
        %v228 = vsel %vm222, %v225, %v227
        %v229 = vsel %vm221, %v208, %v211
        %v230 = vsel %vm224, %v217, 920167782
        %v231 = vsel %vm223, %v214, %v230
        %v232 = vsel %vm222, %v229, %v231
        %v233 = vsel %vm221, %v211, %v214
        %v234 = vsel %vm224, %v220, 1326507024
        %v235 = vsel %vm223, %v217, %v234
        %v236 = vsel %vm222, %v233, %v235
        %v237 = vshll.u32 %v197, 8
        %v238 = vmul.u32.u64.compose %v237, %v236
        %v239 = vextract.low.u32 %v238
        %v240 = vextract.high.u32 %v238
        %v241 = vmul.u32.u64.compose %v237, %v232
        %v242 = vextract.low.u32 %v241
        %v243 = vextract.high.u32 %v241
        %v244 = vmul.u32 %v237, %v228
        %v245 = vadd.s32 %v240, %v242
        %vm246 = vc.u32 %v240, %v242
        %v247 = vadd.s32 %v243, 1
        %v248 = vsel %vm246, %v247, %v243
        %v249 = vadd.s32 %v244, %v248
        %v250 = vadd.s32 %v249, 536870912
        %v251 = vshrl.u32 %v250, 30
        %v252 = vshll.u32 %v251, 30
        %v253 = vsub.s32 %v249, %v252
        %vm254 = vcmp.lt.s32.totalorder %v253, 0
        %v255 = vsub.s32 0, %v253
        %v256 = vsel %vm254, %v255, %v253
        %v257 = vclz %v256
        %v258 = vsub.s32 %v257, 2
        %vm259 = vcmp.gt.s32.totalorder 0, %v258
        %v260 = vsel %vm259, 0, %v258
        %v261 = vsub.s32 32, %v260
        %v262 = vshll.u32 %v253, %v260
        %v263 = vshrl.u32 %v245, %v261
        %v264 = vor.u32 %v262, %v263
        %v265 = vsub.s32 4294967266, %v260
        %v266 = vadd.s32 %v265, 127
        %v267 = vshll.u32 %v266, 23
        %v268 = vor.u32 4788187, %v267
        %v269 = vand.u32 2147483647, %v268
        %v271 = vcvt.s32.f32 %v264
        %v272 = vmul.f32 %v271, %v269
        %v273 = vxor.u32 %v272, 2147483648
        %v274 = vsel %vm191, %v273, %v272
        %v275 = vsub.s32 4, %v251
        %v276 = vsel %vm191, %v275, %v251
        %v277 = vsel %vm190, %v188, %v274
        %v278 = vsel %vm190, 0, %v276
        %v279 = vcosq.f32.pop %v277
        %v280 = vsinq.f32.pop %v277
        %vm281 = vweird.f32 %v188
        %v282 = vadd.s32 %v278, 3
        %v283 = vand.u32 %v282, 3
        %vm284 = vcmp.lt.s32.totalorder %v283, 2
        %vm285 = vcmp.eq.s32.totalorder %v283, 0
        %v286 = vxor.u32 %v280, 2147483648
        %v287 = vsel %vm285, %v279, %v286
        %vm288 = vcmp.eq.s32.totalorder %v283, 2
        %v289 = vxor.u32 %v279, 2147483648
        %v290 = vsel %vm288, %v289, %v280
        %v291 = vsel %vm284, %v287, %v290
        %v292 = vsel %vm281, nan, %v291
        %v293 = vld [vmem:[#allocation2] sm:$0xff]
        %v294 = vadd.f32 %v293, %v292
        %vm295 = vcmask 261120
        %296 = vst.msk [vmem:[%s155] sm:$0xff] %vm295, %v294
        %s297 = sand.u32 %s86, 1
        %s298 = scalar_lea.sflag [#allocation7], %s297
        %s299 = sand.u32 %s86, 1
        %s300 = smul.addr %s299, 8
        %s301 = scalar_lea.vmem [#allocation8], %s300
        // Predicated region
        $region40: #{tpu_custom_call.1} parent=27 // pred_check
          %p302 = pneg %p96
        $region41: #{tpu_custom_call.1} parent=27 // pred_check_branch
          %304 = sbr.rel (%p302) target = $region43
        $region42: #{tpu_custom_call.1} parent=27 // pred_region
          %s306 = ssub.s32 128, 128
          %307 = vsyncadd %s298, %s306
          %s308 = sadd.s32 %s27, %s26
          %s309 = smul.addr %s308, 128
          %s310 = scalar_lea.hbm %s3, %s309
          %s312 = sshll.u32 %s301, 4
          %s313 = int_to_ptr.vmem [resolvable:$true] %s312
          %315 = dma.vmem_to_hbm [thread:$0]  %s313, 128, %s310, %s298
        $region43: #{tpu_custom_call.1} parent=27 // pred_fallthru
          _
      $region28: #{tpu_custom_call.1} parent=5 // pred_fallthru
        _
      %p316 = scmp.le.s32.totalorder 2, %s17
      // Predicated region
      $region44: #{tpu_custom_call.1} parent=5 // pred_check
        %p317 = pneg %p316
      $region45: #{tpu_custom_call.1} parent=5 // pred_check_branch
        %319 = sbr.rel (%p317) target = $region47
      $region46: #{tpu_custom_call.1} parent=5 // pred_region
        %s320 = ssub.s32 %s17, 2
        // Predicated region
        $region48: #{tpu_custom_call.1} parent=46 // pred_check
          %p321 = pneg %p102
        $region49: #{tpu_custom_call.1} parent=46 // pred_check_branch
          %323 = sbr.rel (%p321) target = $region51
        $region50: #{tpu_custom_call.1} parent=46 // pred_region
          %s324 = sand.u32 %s87, 1
          %s325 = scalar_lea.sflag [#allocation7], %s324
          %s326 = sand.u32 %s87, 1
          %s327 = smul.addr %s326, 8
          %s328 = scalar_lea.vmem [#allocation8], %s327
          %329 = dma.done %s325, 128
        $region51: #{tpu_custom_call.1} parent=46 // pred_fallthru
          _
      $region47: #{tpu_custom_call.1} parent=5 // pred_fallthru
        _
    $region6: #{tpu_custom_call.1} parent=1 // loop_footer
      %s21 = sadd.s32 1, %s17
    $region7: #{tpu_custom_call.1} parent=1 // loop_footer_branch
      %16 = sbr.rel target = $region3
    $region8: #{tpu_custom_call.1} parent=1 // loop_exit
      _
    %330 = vsyncpa [#allocation6], 1
    %s331 = scalar_lea.sflag [#allocation6], 1
    %332 = vsyncpa %s331, 1
    %333 = vsyncpa [#allocation7], 1
    %s334 = scalar_lea.sflag [#allocation7], 1
    %335 = vsyncpa %s334, 1

</llo_original>
